<compile_context>
chip_gen: v5e
topology: v5e:2x2
jax: 0.10.0
libtpu: 0.0.40
codegen_flags: <defaults>
</compile_context>

<pallas_src>
import jax
import jax.numpy as jnp
from jax.experimental import pallas as pl
from jax.experimental.pallas import tpu as pltpu


def _rup(v, m):
    return (v + m - 1) // m * m


def _pick_block_b(batch):
    """Batches per grid step.  Multiples of 16 once batch allows (M>=256 per
    MXU pass on v6e/v7x), capped at 128, keeping >=2 grid steps when possible
    so v7x can shard the parallel grid across its two TensorCores."""
    if _rup(batch, 8) <= 8:
        return 8
    if _rup(batch, 16) <= 16:
        return 16
    bb = 128
    while bb > 16 and _rup(batch, bb) < 2 * bb:
        bb //= 2
    return bb


def _cnn_kernel(xcol_ref, wconv_ref, bconv_ref, wlin_ref, blin_ref, out_ref):
    BB, TP, CKP = xcol_ref.shape
    OP = wconv_ref.shape[1]

    # Conv1d as one MXU matmul on the aligned im2col block.
    xcol = xcol_ref[...].reshape(BB * TP, CKP)            # free view (TP%8==0, CKP%128==0)
    h = jnp.dot(xcol, wconv_ref[...],
                preferred_element_type=jnp.float32)       # [BB*TP, OP]
    h = h.reshape(BB, TP, OP)                             # free view

    # MaxPool1d over the conv length.  Padded t rows are edge-replicated in the
    # wrapper, so no masking is needed here — pure sublane/XLU reduce.
    pooled = jnp.max(h, axis=1)                           # [BB, OP]

    # Conv bias after the pool (exact: bias is constant over t), then ReLU.
    pooled = jnp.maximum(pooled + bconv_ref[...], 0.0)

    out = jnp.dot(pooled, wlin_ref[...],
                  preferred_element_type=jnp.float32)     # [BB, DP]
    out_ref[...] = (out + blin_ref[...]).astype(out_ref.dtype)


def make_cnn_forward(w_conv, b_conv, w_lin, b_lin):
    """w_conv: [O=230, C_in, K=3] (PyTorch Conv1d layout).  b_conv: [O].
    w_lin: [O, out_dim]  (i.e. nn.Linear.weight.T).  b_lin: [out_dim].
    Returns a jitted forward(x) for x: [B, C_in, L] (NCL, like nn.Conv1d)."""
    O, C, K = w_conv.shape
    D = w_lin.shape[1]

    CKP = _rup(C * K, 128)   # 36  -> 128 (lane-aligned contraction)
    OP = _rup(O, 128)        # 230 -> 256 (lane-dense conv channels)
    DP = _rup(D, 128)        # 64  -> 128 (lane-dense output)

    # --- one-time weight prep (hoisted out of the per-call path) -------------
    # Conv weight flattened to the (k*C + c) ordering used by the im2col.
    w_conv_mat = jnp.transpose(w_conv, (2, 1, 0)).reshape(K * C, O)
    w_conv_mat = jnp.pad(w_conv_mat, ((0, CKP - K * C), (0, OP - O)))
    b_conv_row = jnp.pad(b_conv.reshape(1, O), ((0, 0), (0, OP - O)))
    w_lin_pad = jnp.pad(w_lin, ((0, OP - O), (0, DP - D)))
    b_lin_row = jnp.pad(b_lin.reshape(1, D), ((0, 0), (0, DP - D)))

    @jax.jit
    def forward(x):
        B, C_in, L = x.shape
        assert C_in == C, "channel mismatch"
        T = L - K + 1                       # conv output length == pool window
        TP = _rup(T, 8)                     # sublane-aligned conv length
        block_b = _pick_block_b(B)
        BP = _rup(B, block_b)

        # im2col: x_col[b, t, k*C + c] = x[b, c, t + k]
        x_nlc = jnp.transpose(x, (0, 2, 1))                              # [B, L, C]
        x_col = jnp.concatenate([x_nlc[:, k:k + T, :] for k in range(K)],
                                axis=-1)                                 # [B, T, K*C]
        # Edge-replicate the t axis (duplicated rows can't change the max),
        # zero-pad the batch and C*K axes (must stay zeros for correctness).
        x_col = jnp.pad(x_col, ((0, 0), (0, TP - T), (0, 0)), mode="edge")
        x_col = jnp.pad(x_col, ((0, BP - B), (0, 0), (0, CKP - K * C)))

        flops = 2 * B * T * (K * C) * O + 2 * B * O * D
        bytes_accessed = 4 * (B * T * K * C + K * C * O + O
                              + O * D + D + B * D)

        out = pl.pallas_call(
            _cnn_kernel,
            out_shape=jax.ShapeDtypeStruct((BP, DP), jnp.float32),
            grid_spec=pltpu.PrefetchScalarGridSpec(
                num_scalar_prefetch=0,
                grid=(BP // block_b,),
                in_specs=[
                    pl.BlockSpec((block_b, TP, CKP), lambda i: (i, 0, 0)),
                    # Constant index_maps: weights/biases stay VMEM-resident
                    # across the whole grid (single DMA each).
                    pl.BlockSpec((CKP, OP), lambda i: (0, 0)),
                    pl.BlockSpec((1, OP), lambda i: (0, 0)),
                    pl.BlockSpec((OP, DP), lambda i: (0, 0)),
                    pl.BlockSpec((1, DP), lambda i: (0, 0)),
                ],
                out_specs=pl.BlockSpec((block_b, DP), lambda i: (i, 0)),
            ),
            compiler_params=pltpu.CompilerParams(
                dimension_semantics=("parallel",)),
            cost_estimate=pl.CostEstimate(flops=flops, transcendentals=0,
                                          bytes_accessed=bytes_accessed),
        )(x_col, w_conv_mat, b_conv_row, w_lin_pad, b_lin_row)

        return out[:B, :D]

    return forward


if __name__ == "__main__":
    # cnn_input_shape = [max_len, feat] = [16, 12]; out_dim = 64
    B, C_in, L = 2, 12, 16
    OUT_CH, K, OUT_DIM = 230, 3, 64

    key = jax.random.PRNGKey(0)
    k1, k2, k3, k4, k5 = jax.random.split(key, 5)
    x = jax.random.normal(k1, (B, C_in, L), jnp.float32)
    w_conv = jax.random.normal(k2, (OUT_CH, C_in, K), jnp.float32) * 0.1
    b_conv = jax.random.normal(k3, (OUT_CH,), jnp.float32) * 0.1
    w_lin = jax.random.normal(k4, (OUT_CH, OUT_DIM), jnp.float32) * 0.1
    b_lin = jax.random.normal(k5, (OUT_DIM,), jnp.float32) * 0.1

    forward = make_cnn_forward(w_conv, b_conv, w_lin, b_lin)
    out = jax.block_until_ready(forward(x))

    # Pure-JAX reference (same semantics as the PyTorch forward).
    T = L - K + 1
    conv = sum(
        jnp.einsum("bcl,oc->bol", x[:, :, k:k + T], w_conv[:, :, k])
        for k in range(K)
    ) + b_conv[None, :, None]                       # [B, 230, T]
    ref = jnp.maximum(jnp.max(conv, axis=-1), 0.0) @ w_lin + b_lin[None, :]

    assert out.shape == (B, OUT_DIM)
    assert jnp.allclose(out, ref, atol=1e-4, rtol=1e-4)
    print("KERNEL_OK")
</pallas_src>

<mosaic_0001>
module attributes {stable_mosaic.version = 11 : i64} {
  func.func @_cnn_kernel(%arg0: i32, %arg1: memref<8x16x128xf32, #tpu.memory_space<vmem>>, %arg2: memref<128x256xf32, #tpu.memory_space<vmem>>, %arg3: memref<1x256xf32, #tpu.memory_space<vmem>>, %arg4: memref<256x128xf32, #tpu.memory_space<vmem>>, %arg5: memref<1x128xf32, #tpu.memory_space<vmem>>, %arg6: memref<8x128xf32, #tpu.memory_space<vmem>>) attributes {dimension_semantics = [#tpu.dimension_semantics<parallel>], iteration_bounds = array<i64: 1>, scalar_prefetch = 0 : i64, scratch_operands = 0 : i64, tpu.core_type = #tpu.core_type<tc>, window_params = [{transform_indices = @transform_0, window_bounds = array<i64: 8, 16, 128>}, {pipeline_mode = #tpu.pipeline_mode<synchronous>, transform_indices = @transform_1, window_bounds = array<i64: 128, 256>}, {pipeline_mode = #tpu.pipeline_mode<synchronous>, transform_indices = @transform_2, window_bounds = array<i64: 1, 256>}, {pipeline_mode = #tpu.pipeline_mode<synchronous>, transform_indices = @transform_3, window_bounds = array<i64: 256, 128>}, {pipeline_mode = #tpu.pipeline_mode<synchronous>, transform_indices = @transform_4, window_bounds = array<i64: 1, 128>}, {transform_indices = @transform_5, window_bounds = array<i64: 8, 128>}]} {
    %c0 = arith.constant 0 : index
    %c0_0 = arith.constant 0 : index
    %c0_1 = arith.constant 0 : index
    %0 = vector.load %arg1[%c0, %c0_0, %c0_1] : memref<8x16x128xf32, #tpu.memory_space<vmem>>, vector<8x16x128xf32>
    %1 = vector.shape_cast %0 : vector<8x16x128xf32> to vector<128x128xf32>
    %c0_2 = arith.constant 0 : index
    %c0_3 = arith.constant 0 : index
    %2 = vector.load %arg2[%c0_2, %c0_3] : memref<128x256xf32, #tpu.memory_space<vmem>>, vector<128x256xf32>
    %cst = arith.constant dense<0.000000e+00> : vector<128x256xf32>
    %3 = tpu.matmul %1, %2, %cst {dimension_numbers = #tpu.dot_dimension_numbers<[1], [0], [0], [1], [0, 0, 1, 1], [], []>} : vector<128x128xf32>, vector<128x256xf32>, vector<128x256xf32> -> vector<128x256xf32>
    %4 = vector.shape_cast %3 : vector<128x256xf32> to vector<8x16x256xf32>
    %cst_4 = arith.constant dense<0xFF800000> : vector<8x256xf32>
    %5 = vector.multi_reduction <maximumf>, %4, %cst_4 [1] : vector<8x16x256xf32> to vector<8x256xf32>
    %c0_5 = arith.constant 0 : index
    %c0_6 = arith.constant 0 : index
    %6 = vector.load %arg3[%c0_5, %c0_6] : memref<1x256xf32, #tpu.memory_space<vmem>>, vector<1x256xf32>
    %7 = vector.broadcast %6 : vector<1x256xf32> to vector<8x256xf32>
    %8 = arith.addf %5, %7 : vector<8x256xf32>
    %cst_7 = arith.constant 0.000000e+00 : f32
    %9 = vector.broadcast %cst_7 : f32 to vector<8x256xf32>
    %10 = arith.maximumf %8, %9 : vector<8x256xf32>
    %c0_8 = arith.constant 0 : index
    %c0_9 = arith.constant 0 : index
    %11 = vector.load %arg4[%c0_8, %c0_9] : memref<256x128xf32, #tpu.memory_space<vmem>>, vector<256x128xf32>
    %cst_10 = arith.constant dense<0.000000e+00> : vector<8x128xf32>
    %12 = tpu.matmul %10, %11, %cst_10 {dimension_numbers = #tpu.dot_dimension_numbers<[1], [0], [0], [1], [0, 0, 1, 1], [], []>} : vector<8x256xf32>, vector<256x128xf32>, vector<8x128xf32> -> vector<8x128xf32>
    %c0_11 = arith.constant 0 : index
    %c0_12 = arith.constant 0 : index
    %13 = vector.load %arg5[%c0_11, %c0_12] : memref<1x128xf32, #tpu.memory_space<vmem>>, vector<1x128xf32>
    %14 = vector.broadcast %13 : vector<1x128xf32> to vector<8x128xf32>
    %15 = arith.addf %12, %14 : vector<8x128xf32>
    %c0_13 = arith.constant 0 : index
    %c0_14 = arith.constant 0 : index
    %16 = vector.load %arg6[%c0_13, %c0_14] : memref<8x128xf32, #tpu.memory_space<vmem>>, vector<8x128xf32>
    tpu.vector_store %arg6[%c0_13, %c0_14], %15 {strides = array<i32>} : memref<8x128xf32, #tpu.memory_space<vmem>>, vector<8x128xf32>,
    return
  }
  func.func @transform_0(%arg0: i32) -> (i32, i32, i32) {
    %c0_i32 = arith.constant 0 : i32
    %c0_i32_0 = arith.constant 0 : i32
    %c0_i32_1 = arith.constant 0 : i32
    return %arg0, %c0_i32, %c0_i32_0 : i32, i32, i32
  }
  func.func @transform_1(%arg0: i32) -> (i32, i32) {
    %c0_i32 = arith.constant 0 : i32
    %c0_i32_0 = arith.constant 0 : i32
    %c0_i32_1 = arith.constant 0 : i32
    return %c0_i32, %c0_i32_0 : i32, i32
  }
  func.func @transform_2(%arg0: i32) -> (i32, i32) {
    %c0_i32 = arith.constant 0 : i32
    %c0_i32_0 = arith.constant 0 : i32
    %c0_i32_1 = arith.constant 0 : i32
    return %c0_i32, %c0_i32_0 : i32, i32
  }
  func.func @transform_3(%arg0: i32) -> (i32, i32) {
    %c0_i32 = arith.constant 0 : i32
    %c0_i32_0 = arith.constant 0 : i32
    %c0_i32_1 = arith.constant 0 : i32
    return %c0_i32, %c0_i32_0 : i32, i32
  }
  func.func @transform_4(%arg0: i32) -> (i32, i32) {
    %c0_i32 = arith.constant 0 : i32
    %c0_i32_0 = arith.constant 0 : i32
    %c0_i32_1 = arith.constant 0 : i32
    return %c0_i32, %c0_i32_0 : i32, i32
  }
  func.func @transform_5(%arg0: i32) -> (i32, i32) {
    %c0_i32 = arith.constant 0 : i32
    %c0_i32_0 = arith.constant 0 : i32
    return %arg0, %c0_i32 : i32, i32
  }
}

</mosaic_0001>

<llo_original>
// kernel: forward.1
$region0: #{forward.1}
  #allocation0 [shape = 'u32[]', space=smem, size = 0x4, offset = 0x4, fixed_abs, tag = 'smem constant byte address 0x4 - core index']
  #allocation1 [shape = 'u32[72,128]{1,0:T(1,128)}', space=vmem, size = 0x9000, scoped, tag = 'internal scratch']
  %s0 = inlined_call_operand.vmem [shape: f32[8,16,128], index: 0, kind: input, shape index: {}]
  %s1 = inlined_call_operand.vmem [shape: f32[128,256], index: 1, kind: input, shape index: {}]
  %s2 = inlined_call_operand.vmem [shape: f32[1,256], index: 2, kind: input, shape index: {}]
  %s3 = inlined_call_operand.vmem [shape: f32[256,128], index: 3, kind: input, shape index: {}]
  %s4 = inlined_call_operand.vmem [shape: f32[1,128], index: 4, kind: input, shape index: {}]
  %s5 = inlined_call_operand.vmem [shape: f32[8,128], index: 5, kind: output, shape index: {}]
  %s6 = sld [smem:[#allocation0]]
  $region30: #{forward.1} parent=0
    _
  %s8 = ssub.s32 1, %s6
  %s9 = scalar_select 0, %s8, %s6
  // Predicated region
  $region2: #{forward.1} parent=0 // pred_check
    _
  $region3: #{forward.1} parent=0 // pred_check_branch
    %11 = sbr.rel (0) target = $region5
  $region4: #{forward.1} parent=0 // pred_region
    _
  $region5: #{forward.1} parent=0 // pred_fallthru
    _
  // Predicated region
  $region6: #{forward.1} parent=0 // pred_check
    _
  $region7: #{forward.1} parent=0 // pred_check_branch
    %13 = sbr.rel (0) target = $region9
  $region8: #{forward.1} parent=0 // pred_region
    _
  $region9: #{forward.1} parent=0 // pred_fallthru
    _
  // Predicated region
  $region10: #{forward.1} parent=0 // pred_check
    _
  $region11: #{forward.1} parent=0 // pred_check_branch
    %15 = sbr.rel (0) target = $region13
  $region12: #{forward.1} parent=0 // pred_region
    _
  $region13: #{forward.1} parent=0 // pred_fallthru
    _
  // Predicated region
  $region14: #{forward.1} parent=0 // pred_check
    _
  $region15: #{forward.1} parent=0 // pred_check_branch
    %17 = sbr.rel (0) target = $region17
  $region16: #{forward.1} parent=0 // pred_region
    _
  $region17: #{forward.1} parent=0 // pred_fallthru
    _
  // Predicated region
  $region18: #{forward.1} parent=0 // pred_check
    _
  $region19: #{forward.1} parent=0 // pred_check_branch
    %19 = sbr.rel (0) target = $region21
  $region20: #{forward.1} parent=0 // pred_region
    _
  $region21: #{forward.1} parent=0 // pred_fallthru
    _
  %v20 = vld [vmem:[%s0] sm:$0xff]
  %v21 = vld [vmem:[%s0 + $0x8] sm:$0xff]
  %v22 = vld [vmem:[%s0 + $0x10] sm:$0xff]
  %v23 = vld [vmem:[%s0 + $0x18] sm:$0xff]
  %v24 = vld [vmem:[%s0 + $0x20] sm:$0xff]
  %v25 = vld [vmem:[%s0 + $0x28] sm:$0xff]
  %v26 = vld [vmem:[%s0 + $0x30] sm:$0xff]
  %v27 = vld [vmem:[%s0 + $0x38] sm:$0xff]
  %v28 = vld [vmem:[%s0 + $0x40] sm:$0xff]
  %v29 = vld [vmem:[%s0 + $0x48] sm:$0xff]
  %v30 = vld [vmem:[%s0 + $0x50] sm:$0xff]
  %v31 = vld [vmem:[%s0 + $0x58] sm:$0xff]
  %v32 = vld [vmem:[%s0 + $0x60] sm:$0xff]
  %v33 = vld [vmem:[%s0 + $0x68] sm:$0xff]
  %v34 = vld [vmem:[%s0 + $0x70] sm:$0xff]
  %v35 = vld [vmem:[%s0 + $0x78] sm:$0xff]
  %v36 = vld [vmem:[%s1] sm:$0xff]
  %v37 = vld [vmem:[%s1 + $0x8] sm:$0xff]
  %v38 = vld [vmem:[%s1 + $0x10] sm:$0xff]
  %v39 = vld [vmem:[%s1 + $0x18] sm:$0xff]
  %v40 = vld [vmem:[%s1 + $0x20] sm:$0xff]
  %v41 = vld [vmem:[%s1 + $0x28] sm:$0xff]
  %v42 = vld [vmem:[%s1 + $0x30] sm:$0xff]
  %v43 = vld [vmem:[%s1 + $0x38] sm:$0xff]
  %v44 = vld [vmem:[%s1 + $0x40] sm:$0xff]
  %v45 = vld [vmem:[%s1 + $0x48] sm:$0xff]
  %v46 = vld [vmem:[%s1 + $0x50] sm:$0xff]
  %v47 = vld [vmem:[%s1 + $0x58] sm:$0xff]
  %v48 = vld [vmem:[%s1 + $0x60] sm:$0xff]
  %v49 = vld [vmem:[%s1 + $0x68] sm:$0xff]
  %v50 = vld [vmem:[%s1 + $0x70] sm:$0xff]
  %v51 = vld [vmem:[%s1 + $0x78] sm:$0xff]
  %v52 = vld [vmem:[%s1 + $0x80] sm:$0xff]
  %v53 = vld [vmem:[%s1 + $0x88] sm:$0xff]
  %v54 = vld [vmem:[%s1 + $0x90] sm:$0xff]
  %v55 = vld [vmem:[%s1 + $0x98] sm:$0xff]
  %v56 = vld [vmem:[%s1 + $0xa0] sm:$0xff]
  %v57 = vld [vmem:[%s1 + $0xa8] sm:$0xff]
  %v58 = vld [vmem:[%s1 + $0xb0] sm:$0xff]
  %v59 = vld [vmem:[%s1 + $0xb8] sm:$0xff]
  %v60 = vld [vmem:[%s1 + $0xc0] sm:$0xff]
  %v61 = vld [vmem:[%s1 + $0xc8] sm:$0xff]
  %v62 = vld [vmem:[%s1 + $0xd0] sm:$0xff]
  %v63 = vld [vmem:[%s1 + $0xd8] sm:$0xff]
  %v64 = vld [vmem:[%s1 + $0xe0] sm:$0xff]
  %v65 = vld [vmem:[%s1 + $0xe8] sm:$0xff]
  %v66 = vld [vmem:[%s1 + $0xf0] sm:$0xff]
  %v67 = vld [vmem:[%s1 + $0xf8] sm:$0xff]
  %68 = vmatpush.msra.mxu0 %v66
  %69 = vmatpush.msra.mxu0 %v64
  %70 = vmatpush.msra.mxu0 %v62
  %71 = vmatpush.msra.mxu0 %v60
  %72 = vmatpush.msra.mxu0 %v58
  %73 = vmatpush.msra.mxu0 %v56
  %74 = vmatpush.msra.mxu0 %v54
  %75 = vmatpush.msra.mxu0 %v52
  %76 = vmatpush.msra.mxu0 %v50
  %77 = vmatpush.msra.mxu0 %v48
  %78 = vmatpush.msra.mxu0 %v46
  %79 = vmatpush.msra.mxu0 %v44
  %80 = vmatpush.msra.mxu0 %v42
  %81 = vmatpush.msra.mxu0 %v40
  %82 = vmatpush.msra.mxu0 %v38
  %83 = vmatpush.msra.mxu0 %v36
  %84 = vmatmul.f32.gmra.mxu0 %v20
  %v85 = vpop.f32.mrf.mxu0
  %v86 = vadd.f32 0.0, %v85
  %87 = vmatmul.f32.gmra.mxu0 %v21
  %v88 = vpop.f32.mrf.mxu0
  %v89 = vadd.f32 0.0, %v88
  %90 = vmatmul.f32.gmra.mxu0 %v22
  %v91 = vpop.f32.mrf.mxu0
  %v92 = vadd.f32 0.0, %v91
  %93 = vmatmul.f32.gmra.mxu0 %v23
  %v94 = vpop.f32.mrf.mxu0
  %v95 = vadd.f32 0.0, %v94
  %96 = vmatmul.f32.gmra.mxu0 %v24
  %v97 = vpop.f32.mrf.mxu0
  %v98 = vadd.f32 0.0, %v97
  %99 = vmatmul.f32.gmra.mxu0 %v25
  %v100 = vpop.f32.mrf.mxu0
  %v101 = vadd.f32 0.0, %v100
  %102 = vmatmul.f32.gmra.mxu0 %v26
  %v103 = vpop.f32.mrf.mxu0
  %v104 = vadd.f32 0.0, %v103
  %105 = vmatmul.f32.gmra.mxu0 %v27
  %v106 = vpop.f32.mrf.mxu0
  %v107 = vadd.f32 0.0, %v106
  %108 = vmatmul.f32.gmra.mxu0 %v28
  %v109 = vpop.f32.mrf.mxu0
  %v110 = vadd.f32 0.0, %v109
  %111 = vmatmul.f32.gmra.mxu0 %v29
  %v112 = vpop.f32.mrf.mxu0
  %v113 = vadd.f32 0.0, %v112
  %114 = vmatmul.f32.gmra.mxu0 %v30
  %v115 = vpop.f32.mrf.mxu0
  %v116 = vadd.f32 0.0, %v115
  %117 = vmatmul.f32.gmra.mxu0 %v31
  %v118 = vpop.f32.mrf.mxu0
  %v119 = vadd.f32 0.0, %v118
  %120 = vmatmul.f32.gmra.mxu0 %v32
  %v121 = vpop.f32.mrf.mxu0
  %v122 = vadd.f32 0.0, %v121
  %123 = vmatmul.f32.gmra.mxu0 %v33
  %v124 = vpop.f32.mrf.mxu0
  %v125 = vadd.f32 0.0, %v124
  %126 = vmatmul.f32.gmra.mxu0 %v34
  %v127 = vpop.f32.mrf.mxu0
  %v128 = vadd.f32 0.0, %v127
  %129 = vmatmul.f32.gmra.mxu0 %v35
  %v130 = vpop.f32.mrf.mxu0
  %v131 = vadd.f32 0.0, %v130
  %132 = vdwg.mxu0
  %133 = vmatpush.msra.mxu0 %v67
  %134 = vmatpush.msra.mxu0 %v65
  %135 = vmatpush.msra.mxu0 %v63
  %136 = vmatpush.msra.mxu0 %v61
  %137 = vmatpush.msra.mxu0 %v59
  %138 = vmatpush.msra.mxu0 %v57
  %139 = vmatpush.msra.mxu0 %v55
  %140 = vmatpush.msra.mxu0 %v53
  %141 = vmatpush.msra.mxu0 %v51
  %142 = vmatpush.msra.mxu0 %v49
  %143 = vmatpush.msra.mxu0 %v47
  %144 = vmatpush.msra.mxu0 %v45
  %145 = vmatpush.msra.mxu0 %v43
  %146 = vmatpush.msra.mxu0 %v41
  %147 = vmatpush.msra.mxu0 %v39
  %148 = vmatpush.msra.mxu0 %v37
  %149 = vmatmul.f32.gmra.mxu0 %v20
  %v150 = vpop.f32.mrf.mxu0
  %v151 = vadd.f32 0.0, %v150
  %152 = vmatmul.f32.gmra.mxu0 %v21
  %v153 = vpop.f32.mrf.mxu0
  %v154 = vadd.f32 0.0, %v153
  %155 = vmatmul.f32.gmra.mxu0 %v22
  %v156 = vpop.f32.mrf.mxu0
  %v157 = vadd.f32 0.0, %v156
  %158 = vmatmul.f32.gmra.mxu0 %v23
  %v159 = vpop.f32.mrf.mxu0
  %v160 = vadd.f32 0.0, %v159
  %161 = vmatmul.f32.gmra.mxu0 %v24
  %v162 = vpop.f32.mrf.mxu0
  %v163 = vadd.f32 0.0, %v162
  %164 = vmatmul.f32.gmra.mxu0 %v25
  %v165 = vpop.f32.mrf.mxu0
  %v166 = vadd.f32 0.0, %v165
  %167 = vmatmul.f32.gmra.mxu0 %v26
  %v168 = vpop.f32.mrf.mxu0
  %v169 = vadd.f32 0.0, %v168
  %170 = vmatmul.f32.gmra.mxu0 %v27
  %v171 = vpop.f32.mrf.mxu0
  %v172 = vadd.f32 0.0, %v171
  %173 = vmatmul.f32.gmra.mxu0 %v28
  %v174 = vpop.f32.mrf.mxu0
  %v175 = vadd.f32 0.0, %v174
  %176 = vmatmul.f32.gmra.mxu0 %v29
  %v177 = vpop.f32.mrf.mxu0
  %v178 = vadd.f32 0.0, %v177
  %179 = vmatmul.f32.gmra.mxu0 %v30
  %v180 = vpop.f32.mrf.mxu0
  %v181 = vadd.f32 0.0, %v180
  %182 = vmatmul.f32.gmra.mxu0 %v31
  %v183 = vpop.f32.mrf.mxu0
  %v184 = vadd.f32 0.0, %v183
  %185 = vmatmul.f32.gmra.mxu0 %v32
  %v186 = vpop.f32.mrf.mxu0
  %v187 = vadd.f32 0.0, %v186
  %188 = vmatmul.f32.gmra.mxu0 %v33
  %v189 = vpop.f32.mrf.mxu0
  %v190 = vadd.f32 0.0, %v189
  %191 = vmatmul.f32.gmra.mxu0 %v34
  %v192 = vpop.f32.mrf.mxu0
  %v193 = vadd.f32 0.0, %v192
  %194 = vmatmul.f32.gmra.mxu0 %v35
  %v195 = vpop.f32.mrf.mxu0
  %v196 = vadd.f32 0.0, %v195
  %197 = vdwg.mxu0
  %v198 = vmax.f32 %v86, %v89
  %v199 = vrot.slane %v198, 4
  %v200 = vmax.f32 %v198, %v199
  %v201 = vrot.slane %v200, 2
  %v202 = vmax.f32 %v200, %v201
  %v203 = vrot.slane %v202, 1
  %v204 = vmax.f32 %v202, %v203
  %v205 = vmax.f32 %v151, %v154
  %v206 = vrot.slane %v205, 4
  %v207 = vmax.f32 %v205, %v206
  %v208 = vrot.slane %v207, 2
  %v209 = vmax.f32 %v207, %v208
  %v210 = vrot.slane %v209, 1
  %v211 = vmax.f32 %v209, %v210
  %v212 = vmax.f32 %v92, %v95
  %v213 = vrot.slane %v212, 4
  %v214 = vmax.f32 %v212, %v213
  %v215 = vrot.slane %v214, 2
  %v216 = vmax.f32 %v214, %v215
  %v217 = vrot.slane %v216, 1
  %v218 = vmax.f32 %v216, %v217
  %v219 = vmax.f32 %v157, %v160
  %v220 = vrot.slane %v219, 4
  %v221 = vmax.f32 %v219, %v220
  %v222 = vrot.slane %v221, 2
  %v223 = vmax.f32 %v221, %v222
  %v224 = vrot.slane %v223, 1
  %v225 = vmax.f32 %v223, %v224
  %v226 = vmax.f32 %v98, %v101
  %v227 = vrot.slane %v226, 4
  %v228 = vmax.f32 %v226, %v227
  %v229 = vrot.slane %v228, 2
  %v230 = vmax.f32 %v228, %v229
  %v231 = vrot.slane %v230, 1
  %v232 = vmax.f32 %v230, %v231
  %v233 = vmax.f32 %v163, %v166
  %v234 = vrot.slane %v233, 4
  %v235 = vmax.f32 %v233, %v234
  %v236 = vrot.slane %v235, 2
  %v237 = vmax.f32 %v235, %v236
  %v238 = vrot.slane %v237, 1
  %v239 = vmax.f32 %v237, %v238
  %v240 = vmax.f32 %v104, %v107
  %v241 = vrot.slane %v240, 4
  %v242 = vmax.f32 %v240, %v241
  %v243 = vrot.slane %v242, 2
  %v244 = vmax.f32 %v242, %v243
  %v245 = vrot.slane %v244, 1
  %v246 = vmax.f32 %v244, %v245
  %v247 = vmax.f32 %v169, %v172
  %v248 = vrot.slane %v247, 4
  %v249 = vmax.f32 %v247, %v248
  %v250 = vrot.slane %v249, 2
  %v251 = vmax.f32 %v249, %v250
  %v252 = vrot.slane %v251, 1
  %v253 = vmax.f32 %v251, %v252
  %v254 = vmax.f32 %v110, %v113
  %v255 = vrot.slane %v254, 4
  %v256 = vmax.f32 %v254, %v255
  %v257 = vrot.slane %v256, 2
  %v258 = vmax.f32 %v256, %v257
  %v259 = vrot.slane %v258, 1
  %v260 = vmax.f32 %v258, %v259
  %v261 = vmax.f32 %v175, %v178
  %v262 = vrot.slane %v261, 4
  %v263 = vmax.f32 %v261, %v262
  %v264 = vrot.slane %v263, 2
  %v265 = vmax.f32 %v263, %v264
  %v266 = vrot.slane %v265, 1
  %v267 = vmax.f32 %v265, %v266
  %v268 = vmax.f32 %v116, %v119
  %v269 = vrot.slane %v268, 4
  %v270 = vmax.f32 %v268, %v269
  %v271 = vrot.slane %v270, 2
  %v272 = vmax.f32 %v270, %v271
  %v273 = vrot.slane %v272, 1
  %v274 = vmax.f32 %v272, %v273
  %v275 = vmax.f32 %v181, %v184
  %v276 = vrot.slane %v275, 4
  %v277 = vmax.f32 %v275, %v276
  %v278 = vrot.slane %v277, 2
  %v279 = vmax.f32 %v277, %v278
  %v280 = vrot.slane %v279, 1
  %v281 = vmax.f32 %v279, %v280
  %v282 = vmax.f32 %v122, %v125
  %v283 = vrot.slane %v282, 4
  %v284 = vmax.f32 %v282, %v283
  %v285 = vrot.slane %v284, 2
  %v286 = vmax.f32 %v284, %v285
  %v287 = vrot.slane %v286, 1
  %v288 = vmax.f32 %v286, %v287
  %v289 = vmax.f32 %v187, %v190
  %v290 = vrot.slane %v289, 4
  %v291 = vmax.f32 %v289, %v290
  %v292 = vrot.slane %v291, 2
  %v293 = vmax.f32 %v291, %v292
  %v294 = vrot.slane %v293, 1
  %v295 = vmax.f32 %v293, %v294
  %v296 = vmax.f32 %v128, %v131
  %v297 = vrot.slane %v296, 4
  %v298 = vmax.f32 %v296, %v297
  %v299 = vrot.slane %v298, 2
  %v300 = vmax.f32 %v298, %v299
  %v301 = vrot.slane %v300, 1
  %v302 = vmax.f32 %v300, %v301
  %v303 = vmax.f32 %v193, %v196
  %v304 = vrot.slane %v303, 4
  %v305 = vmax.f32 %v303, %v304
  %v306 = vrot.slane %v305, 2
  %v307 = vmax.f32 %v305, %v306
  %v308 = vrot.slane %v307, 1
  %v309 = vmax.f32 %v307, %v308
  %v310 = vld [vmem:[%s2] sm:$0x3]
  %v312 = vperm.slane %v310, 0
  %v313 = vperm.slane %v310, 1
  %v316 = vadd.f32 %v204, %v312
  %v317 = vadd.f32 %v211, %v313
  %v318 = vadd.f32 %v218, %v312
  %v319 = vadd.f32 %v225, %v313
  %v320 = vadd.f32 %v232, %v312
  %v321 = vadd.f32 %v239, %v313
  %v322 = vadd.f32 %v246, %v312
  %v323 = vadd.f32 %v253, %v313
  %v324 = vadd.f32 %v260, %v312
  %v325 = vadd.f32 %v267, %v313
  %v326 = vadd.f32 %v274, %v312
  %v327 = vadd.f32 %v281, %v313
  %v328 = vadd.f32 %v288, %v312
  %v329 = vadd.f32 %v295, %v313
  %v330 = vadd.f32 %v302, %v312
  %v331 = vadd.f32 %v309, %v313
  %v332 = vmax.f32 %v316, 0.0
  %v333 = vmax.f32 %v317, 0.0
  %v334 = vmax.f32 %v318, 0.0
  %v335 = vmax.f32 %v319, 0.0
  %v336 = vmax.f32 %v320, 0.0
  %v337 = vmax.f32 %v321, 0.0
  %v338 = vmax.f32 %v322, 0.0
  %v339 = vmax.f32 %v323, 0.0
  %v340 = vmax.f32 %v324, 0.0
  %v341 = vmax.f32 %v325, 0.0
  %v342 = vmax.f32 %v326, 0.0
  %v343 = vmax.f32 %v327, 0.0
  %v344 = vmax.f32 %v328, 0.0
  %v345 = vmax.f32 %v329, 0.0
  %v346 = vmax.f32 %v330, 0.0
  %v347 = vmax.f32 %v331, 0.0
  %v348 = vld [vmem:[%s3] sm:$0xff]
  %v349 = vld [vmem:[%s3 + $0x8] sm:$0xff]
  %v350 = vld [vmem:[%s3 + $0x10] sm:$0xff]
  %v351 = vld [vmem:[%s3 + $0x18] sm:$0xff]
  %v352 = vld [vmem:[%s3 + $0x20] sm:$0xff]
  %v353 = vld [vmem:[%s3 + $0x28] sm:$0xff]
  %v354 = vld [vmem:[%s3 + $0x30] sm:$0xff]
  %v355 = vld [vmem:[%s3 + $0x38] sm:$0xff]
  %v356 = vld [vmem:[%s3 + $0x40] sm:$0xff]
  %v357 = vld [vmem:[%s3 + $0x48] sm:$0xff]
  %v358 = vld [vmem:[%s3 + $0x50] sm:$0xff]
  %v359 = vld [vmem:[%s3 + $0x58] sm:$0xff]
  %v360 = vld [vmem:[%s3 + $0x60] sm:$0xff]
  %v361 = vld [vmem:[%s3 + $0x68] sm:$0xff]
  %v362 = vld [vmem:[%s3 + $0x70] sm:$0xff]
  %v363 = vld [vmem:[%s3 + $0x78] sm:$0xff]
  %v364 = vld [vmem:[%s3 + $0x80] sm:$0xff]
  %v365 = vld [vmem:[%s3 + $0x88] sm:$0xff]
  %v366 = vld [vmem:[%s3 + $0x90] sm:$0xff]
  %v367 = vld [vmem:[%s3 + $0x98] sm:$0xff]
  %v368 = vld [vmem:[%s3 + $0xa0] sm:$0xff]
  %v369 = vld [vmem:[%s3 + $0xa8] sm:$0xff]
  %v370 = vld [vmem:[%s3 + $0xb0] sm:$0xff]
  %v371 = vld [vmem:[%s3 + $0xb8] sm:$0xff]
  %v372 = vld [vmem:[%s3 + $0xc0] sm:$0xff]
  %v373 = vld [vmem:[%s3 + $0xc8] sm:$0xff]
  %v374 = vld [vmem:[%s3 + $0xd0] sm:$0xff]
  %v375 = vld [vmem:[%s3 + $0xd8] sm:$0xff]
  %v376 = vld [vmem:[%s3 + $0xe0] sm:$0xff]
  %v377 = vld [vmem:[%s3 + $0xe8] sm:$0xff]
  %v378 = vld [vmem:[%s3 + $0xf0] sm:$0xff]
  %v379 = vld [vmem:[%s3 + $0xf8] sm:$0xff]
  %v380 = vld [vmem:[%s4] sm:$0x1]
  %v382 = vperm.slane %v380, 0
  %v400 = vrot.slane %v334, 7
  %vm401 = vcmask 1041409
  %v402 = vsel %vm401, %v400, %v332
  %v403 = vrot.slane %v336, 6
  %vm404 = vcmask 1042434
  %v405 = vsel %vm404, %v403, %v402
  %v406 = vrot.slane %v338, 5
  %vm407 = vcmask 1043459
  %v408 = vsel %vm407, %v406, %v405
  %v409 = vrot.slane %v340, 4
  %vm410 = vcmask 1044484
  %v411 = vsel %vm410, %v409, %v408
  %v412 = vrot.slane %v342, 3
  %vm413 = vcmask 1045509
  %v414 = vsel %vm413, %v412, %v411
  %v415 = vrot.slane %v344, 2
  %vm416 = vcmask 1046534
  %v417 = vsel %vm416, %v415, %v414
  %v418 = vrot.slane %v346, 1
  %vm419 = vcmask 1047559
  %v420 = vsel %vm419, %v418, %v417
  %v421 = vrot.slane %v335, 7
  %v422 = vsel %vm401, %v421, %v333
  %v423 = vrot.slane %v337, 6
  %v424 = vsel %vm404, %v423, %v422
  %v425 = vrot.slane %v339, 5
  %v426 = vsel %vm407, %v425, %v424
  %v427 = vrot.slane %v341, 4
  %v428 = vsel %vm410, %v427, %v426
  %v429 = vrot.slane %v343, 3
  %v430 = vsel %vm413, %v429, %v428
  %v431 = vrot.slane %v345, 2
  %v432 = vsel %vm416, %v431, %v430
  %v433 = vrot.slane %v347, 1
  %v434 = vsel %vm419, %v433, %v432
  %437 = vmatpush.msra.mxu0 %v363
  %438 = vmatpush.msra.mxu0 %v362
  %439 = vmatpush.msra.mxu0 %v361
  %440 = vmatpush.msra.mxu0 %v360
  %441 = vmatpush.msra.mxu0 %v359
  %442 = vmatpush.msra.mxu0 %v358
  %443 = vmatpush.msra.mxu0 %v357
  %444 = vmatpush.msra.mxu0 %v356
  %445 = vmatpush.msra.mxu0 %v355
  %446 = vmatpush.msra.mxu0 %v354
  %447 = vmatpush.msra.mxu0 %v353
  %448 = vmatpush.msra.mxu0 %v352
  %449 = vmatpush.msra.mxu0 %v351
  %450 = vmatpush.msra.mxu0 %v350
  %451 = vmatpush.msra.mxu0 %v349
  %452 = vmatpush.msra.mxu0 %v348
  %453 = vmatmul.f32.gmra.mxu0 %v420
  %v454 = vpop.f32.mrf.mxu0
  %v455 = vadd.f32 %v382, %v454
  %456 = vdwg.mxu0
  %457 = vmatpush.msra.mxu0 %v379
  %458 = vmatpush.msra.mxu0 %v378
  %459 = vmatpush.msra.mxu0 %v377
  %460 = vmatpush.msra.mxu0 %v376
  %461 = vmatpush.msra.mxu0 %v375
  %462 = vmatpush.msra.mxu0 %v374
  %463 = vmatpush.msra.mxu0 %v373
  %464 = vmatpush.msra.mxu0 %v372
  %465 = vmatpush.msra.mxu0 %v371
  %466 = vmatpush.msra.mxu0 %v370
  %467 = vmatpush.msra.mxu0 %v369
  %468 = vmatpush.msra.mxu0 %v368
  %469 = vmatpush.msra.mxu0 %v367
  %470 = vmatpush.msra.mxu0 %v366
  %471 = vmatpush.msra.mxu0 %v365
  %472 = vmatpush.msra.mxu0 %v364
  %473 = vmatmul.f32.gmra.mxu0 %v434
  %v474 = vpop.f32.mrf.mxu0
  %v475 = vadd.f32 %v455, %v474
  %476 = vdwg.mxu0
  %477 = vst [vmem:[%s5] sm:$0xff] %v475
  // Predicated region
  $region22: #{forward.1} parent=0 // pred_check
    _
  $region23: #{forward.1} parent=0 // pred_check_branch
    %479 = sbr.rel (0) target = $region25
  $region24: #{forward.1} parent=0 // pred_region
    _
  $region25: #{forward.1} parent=0 // pred_fallthru
    _
  // Predicated region
  $region26: #{forward.1} parent=0 // pred_check
    _
  $region27: #{forward.1} parent=0 // pred_check_branch
    %481 = sbr.rel (0) target = $region29
  $region28: #{forward.1} parent=0 // pred_region
    _
  $region29: #{forward.1} parent=0 // pred_fallthru
    _

</llo_original>
